<compile_context>
chip_gen: v5e
topology: v5e:2x2
jax: 0.10.0
libtpu: 0.0.40
codegen_flags: <defaults>
</compile_context>

<pallas_src>
from functools import partial

import jax
import jax.numpy as jnp
from jax.experimental import pallas as pl
from jax.experimental.pallas import tpu as pltpu

HIDDEN = [256, 128, 64, 32]
INPUT_SIZE = 20
NUM_CLASSES = 5
NEG_SLOPE = 0.01          # PyTorch LeakyReLU default
BN_EPS = 1e-5
PAD_WIDTH = 128           # lane width: pad the narrow tail layers to this
TILE_MULT = 16            # tile rows multiple of 16 (bf16 sublane packing)
USE_BF16_MATMUL = True    # bf16 MXU operands, f32 accumulation + f32 epilogue
OUT_DTYPE = jnp.bfloat16  # lane-dense bf16 output slab halves HBM writeback


def _round_up(n, m):
    return ((n + m - 1) // m) * m


def _leaky(x):
    # max(x, a*x) == LeakyReLU(x) for 0 < a < 1; 2 VALU ops vs 3 for where().
    return jnp.maximum(x, NEG_SLOPE * x)


# ----------------------------------------------------------------------------
# Kernel: fused Linear(+folded BN)+LeakyReLU chain for one batch tile.
# ----------------------------------------------------------------------------
def mlp_kernel(x_ref,
               w1_ref, b1_ref,
               w2_ref, b2_ref,
               w3_ref, b3_ref,
               w4_ref, b4_ref,
               w5_ref, b5_ref,
               out_ref):
    cdt = w1_ref.dtype  # matmul operand dtype (bf16); accumulation is f32

    h = x_ref[...].astype(cdt)
    # Block 1: Linear(20,256) + folded BN -> LeakyReLU  (Dropout = id in eval)
    h = _leaky(jnp.dot(h, w1_ref[...], preferred_element_type=jnp.float32)
               + b1_ref[...])
    # Block 2: Linear(256,128) + folded BN -> LeakyReLU (Dropout = id in eval)
    h = _leaky(jnp.dot(h.astype(cdt), w2_ref[...],
                       preferred_element_type=jnp.float32) + b2_ref[...])
    # Block 3: Linear(128,64 -> padded 128) + folded BN -> LeakyReLU
    h = _leaky(jnp.dot(h.astype(cdt), w3_ref[...],
                       preferred_element_type=jnp.float32) + b3_ref[...])
    # Block 4: Linear(64,32 -> padded 128,128) -> LeakyReLU
    h = _leaky(jnp.dot(h.astype(cdt), w4_ref[...],
                       preferred_element_type=jnp.float32) + b4_ref[...])
    # Head: Linear(32,5 -> padded 128,128); real logits are columns [:5]
    out = (jnp.dot(h.astype(cdt), w5_ref[...],
                   preferred_element_type=jnp.float32) + b5_ref[...])
    out_ref[...] = out.astype(out_ref.dtype)


# ----------------------------------------------------------------------------
# Parameters: raw (torch-equivalent) params, then fold BN + pad for the kernel.
# ----------------------------------------------------------------------------
def make_raw_params(key):
    """Synthetic parameters with the module's shapes (weights as [in, out])."""
    dims = [INPUT_SIZE] + HIDDEN + [NUM_CLASSES]
    keys = jax.random.split(key, 64)
    ki = 0
    p = {}
    for li in range(5):
        fi, fo = dims[li], dims[li + 1]
        bound = 1.0 / (fi ** 0.5)
        p[f"w{li+1}"] = jax.random.uniform(keys[ki], (fi, fo), jnp.float32,
                                           minval=-bound, maxval=bound); ki += 1
        p[f"b{li+1}"] = jax.random.uniform(keys[ki], (1, fo), jnp.float32,
                                           minval=-bound, maxval=bound); ki += 1
    for li, feat in enumerate(HIDDEN[:3]):
        p[f"g{li+1}"] = 1.0 + 0.01 * jax.random.normal(keys[ki], (1, feat), jnp.float32); ki += 1
        p[f"be{li+1}"] = 0.01 * jax.random.normal(keys[ki], (1, feat), jnp.float32); ki += 1
        p[f"rm{li+1}"] = 0.05 * jax.random.normal(keys[ki], (1, feat), jnp.float32); ki += 1
        p[f"rv{li+1}"] = 1.0 + 0.05 * jax.random.uniform(keys[ki], (1, feat), jnp.float32); ki += 1
    return p


def fold_and_pad(raw):
    """Fold eval-mode BN into the Linear layers and zero-pad narrow layers."""
    kp = {}
    # Blocks 1-3: y = (x@W + b)*s + t  ==  x@(W*s) + (b*s + t)
    for li in range(1, 4):
        s = raw[f"g{li}"] / jnp.sqrt(raw[f"rv{li}"] + BN_EPS)   # [1, F]
        t = raw[f"be{li}"] - raw[f"rm{li}"] * s
        kp[f"w{li}"] = raw[f"w{li}"] * s                        # column-wise fold
        kp[f"b{li}"] = raw[f"b{li}"] * s + t
    kp["w4"], kp["b4"] = raw["w4"], raw["b4"]
    kp["w5"], kp["b5"] = raw["w5"], raw["b5"]

    # Zero-pad the narrow tail layers to the 128-lane width. Padded activation
    # columns stay exactly 0 through bias/LeakyReLU, so the math is unchanged,
    # and the padding costs zero extra MXU passes (still one 128x128 MXU tile).
    kp["w3"] = jnp.pad(kp["w3"], ((0, 0), (0, PAD_WIDTH - HIDDEN[2])))
    kp["b3"] = jnp.pad(kp["b3"], ((0, 0), (0, PAD_WIDTH - HIDDEN[2])))
    kp["w4"] = jnp.pad(kp["w4"], ((0, PAD_WIDTH - HIDDEN[2]),
                                  (0, PAD_WIDTH - HIDDEN[3])))
    kp["b4"] = jnp.pad(kp["b4"], ((0, 0), (0, PAD_WIDTH - HIDDEN[3])))
    kp["w5"] = jnp.pad(kp["w5"], ((0, PAD_WIDTH - HIDDEN[3]),
                                  (0, PAD_WIDTH - NUM_CLASSES)))
    kp["b5"] = jnp.pad(kp["b5"], ((0, 0), (0, PAD_WIDTH - NUM_CLASSES)))

    wdt = jnp.bfloat16 if USE_BF16_MATMUL else jnp.float32
    for li in range(1, 6):
        kp[f"w{li}"] = kp[f"w{li}"].astype(wdt)   # biases stay f32 (f32 accum)
    return kp


# ----------------------------------------------------------------------------
# Wrapper: 1-D grid over the batch, resident weights, lane-dense padded output.
# ----------------------------------------------------------------------------
def _compute_tile(n, tile_n):
    """Batch tile: multiple of 16, capped so the grid has >= 2 steps."""
    n_r = _round_up(n, TILE_MULT)
    # Cap at ~half the (rounded) batch so v7x's two TensorCores both get work.
    half = _round_up(pl.cdiv(n_r, 2), TILE_MULT)
    tile = max(TILE_MULT, min(tile_n, half))
    return _round_up(tile, TILE_MULT)


@partial(jax.jit, static_argnames=("tile_n",))
def deep_aero_net(x, kp, tile_n=4096):
    n, f = x.shape
    assert f == INPUT_SIZE
    tile = _compute_tile(n, tile_n)
    n_pad = _round_up(n, tile)
    if n_pad != n:
        x = jnp.pad(x, ((0, n_pad - n), (0, 0)))

    args = (x,
            kp["w1"], kp["b1"], kp["w2"], kp["b2"], kp["w3"], kp["b3"],
            kp["w4"], kp["b4"], kp["w5"], kp["b5"])

    def resident(a):
        # Full-array block, same (0, 0) index every step -> stays in VMEM.
        return pl.BlockSpec(a.shape, lambda i: (0, 0))

    in_specs = ([pl.BlockSpec((tile, INPUT_SIZE), lambda i: (i, 0))] +
                [resident(a) for a in args[1:]])
    out_specs = pl.BlockSpec((tile, PAD_WIDTH), lambda i: (i, 0))

    flops = 2 * n_pad * (INPUT_SIZE * 256 + 256 * 128 + 3 * 128 * 128)
    param_bytes = sum(int(a.size) * a.dtype.itemsize for a in args[1:])
    out_itemsize = jnp.dtype(OUT_DTYPE).itemsize
    bytes_accessed = (n_pad * INPUT_SIZE * 4 +
                      n_pad * PAD_WIDTH * out_itemsize + param_bytes)

    out = pl.pallas_call(
        mlp_kernel,
        out_shape=jax.ShapeDtypeStruct((n_pad, PAD_WIDTH), OUT_DTYPE),
        grid=(n_pad // tile,),
        in_specs=in_specs,
        out_specs=out_specs,
        compiler_params=pltpu.CompilerParams(
            dimension_semantics=("parallel",),      # shard batch across TCs
            vmem_limit_bytes=32 * 1024 * 1024),     # headroom for v7x's 64 MiB
        cost_estimate=pl.CostEstimate(
            flops=flops, transcendentals=0, bytes_accessed=bytes_accessed),
    )(*args)

    # Single fused slice + cast back to f32 logits.
    return out[:n, :NUM_CLASSES].astype(jnp.float32)


# ----------------------------------------------------------------------------
# Plain-JAX reference of the original module's eval-mode forward (explicit BN).
# ----------------------------------------------------------------------------
def reference(x, raw):
    def bn(h, i):
        return ((h - raw[f"rm{i}"]) / jnp.sqrt(raw[f"rv{i}"] + BN_EPS)
                * raw[f"g{i}"] + raw[f"be{i}"])
    def leaky(h):
        return jnp.where(h > 0, h, NEG_SLOPE * h)
    h = leaky(bn(jnp.dot(x, raw["w1"], precision="highest") + raw["b1"], 1))
    h = leaky(bn(jnp.dot(h, raw["w2"], precision="highest") + raw["b2"], 2))
    h = leaky(bn(jnp.dot(h, raw["w3"], precision="highest") + raw["b3"], 3))
    h = leaky(jnp.dot(h, raw["w4"], precision="highest") + raw["b4"])
    return jnp.dot(h, raw["w5"], precision="highest") + raw["b5"]


if __name__ == "__main__":
    key = jax.random.PRNGKey(0)
    k_param, k_x = jax.random.split(key)
    raw = make_raw_params(k_param)
    kp = fold_and_pad(raw)

    batch = 200  # deliberately not a multiple of the tile size
    x = jax.random.normal(k_x, (batch, INPUT_SIZE), jnp.float32)

    # Small tile -> exercises a multi-step grid (pipelined, resident weights).
    out_tiled = jax.block_until_ready(deep_aero_net(x, kp, tile_n=64))
    # Default tile -> capped to >= 2 grid steps for megacore sharding.
    out_big = jax.block_until_ready(deep_aero_net(x, kp))

    ref = reference(x, raw)
    tol = 5e-2  # bf16 MXU operands + bf16 output store
    assert out_tiled.shape == (batch, NUM_CLASSES)
    assert out_big.shape == (batch, NUM_CLASSES)
    assert jnp.allclose(out_tiled, ref, atol=tol, rtol=tol)
    assert jnp.allclose(out_big, ref, atol=tol, rtol=tol)
    print("KERNEL_OK")
</pallas_src>

<mosaic_0001>
module attributes {stable_mosaic.version = 11 : i64} {
  func.func @mlp_kernel(%arg0: i32, %arg1: memref<64x20xf32, #tpu.memory_space<vmem>>, %arg2: memref<20x256xbf16, #tpu.memory_space<vmem>>, %arg3: memref<1x256xf32, #tpu.memory_space<vmem>>, %arg4: memref<256x128xbf16, #tpu.memory_space<vmem>>, %arg5: memref<1x128xf32, #tpu.memory_space<vmem>>, %arg6: memref<128x128xbf16, #tpu.memory_space<vmem>>, %arg7: memref<1x128xf32, #tpu.memory_space<vmem>>, %arg8: memref<128x128xbf16, #tpu.memory_space<vmem>>, %arg9: memref<1x128xf32, #tpu.memory_space<vmem>>, %arg10: memref<128x128xbf16, #tpu.memory_space<vmem>>, %arg11: memref<1x128xf32, #tpu.memory_space<vmem>>, %arg12: memref<64x128xbf16, #tpu.memory_space<vmem>>) attributes {dimension_semantics = [#tpu.dimension_semantics<parallel>], iteration_bounds = array<i64: 4>, scalar_prefetch = 0 : i64, scratch_operands = 0 : i64, tpu.core_type = #tpu.core_type<tc>, window_params = [{transform_indices = @transform_0, window_bounds = array<i64: 64, 20>}, {pipeline_mode = #tpu.pipeline_mode<synchronous>, transform_indices = @transform_1, window_bounds = array<i64: 20, 256>}, {pipeline_mode = #tpu.pipeline_mode<synchronous>, transform_indices = @transform_2, window_bounds = array<i64: 1, 256>}, {pipeline_mode = #tpu.pipeline_mode<synchronous>, transform_indices = @transform_3, window_bounds = array<i64: 256, 128>}, {pipeline_mode = #tpu.pipeline_mode<synchronous>, transform_indices = @transform_4, window_bounds = array<i64: 1, 128>}, {pipeline_mode = #tpu.pipeline_mode<synchronous>, transform_indices = @transform_5, window_bounds = array<i64: 128, 128>}, {pipeline_mode = #tpu.pipeline_mode<synchronous>, transform_indices = @transform_6, window_bounds = array<i64: 1, 128>}, {pipeline_mode = #tpu.pipeline_mode<synchronous>, transform_indices = @transform_7, window_bounds = array<i64: 128, 128>}, {pipeline_mode = #tpu.pipeline_mode<synchronous>, transform_indices = @transform_8, window_bounds = array<i64: 1, 128>}, {pipeline_mode = #tpu.pipeline_mode<synchronous>, transform_indices = @transform_9, window_bounds = array<i64: 128, 128>}, {pipeline_mode = #tpu.pipeline_mode<synchronous>, transform_indices = @transform_10, window_bounds = array<i64: 1, 128>}, {transform_indices = @transform_11, window_bounds = array<i64: 64, 128>}]} {
    %c0 = arith.constant 0 : index
    %c0_0 = arith.constant 0 : index
    %0 = vector.load %arg1[%c0, %c0_0] : memref<64x20xf32, #tpu.memory_space<vmem>>, vector<64x20xf32>
    %1 = arith.truncf %0 : vector<64x20xf32> to vector<64x20xbf16>
    %c0_1 = arith.constant 0 : index
    %c0_2 = arith.constant 0 : index
    %2 = vector.load %arg2[%c0_1, %c0_2] : memref<20x256xbf16, #tpu.memory_space<vmem>>, vector<20x256xbf16>
    %cst = arith.constant dense<0.000000e+00> : vector<64x256xf32>
    %3 = tpu.matmul %1, %2, %cst {dimension_numbers = #tpu.dot_dimension_numbers<[1], [0], [0], [1], [0, 0, 1, 1], [], []>} : vector<64x20xbf16>, vector<20x256xbf16>, vector<64x256xf32> -> vector<64x256xf32>
    %c0_3 = arith.constant 0 : index
    %c0_4 = arith.constant 0 : index
    %4 = vector.load %arg3[%c0_3, %c0_4] : memref<1x256xf32, #tpu.memory_space<vmem>>, vector<1x256xf32>
    %5 = vector.broadcast %4 : vector<1x256xf32> to vector<64x256xf32>
    %6 = arith.addf %3, %5 : vector<64x256xf32>
    %cst_5 = arith.constant 0.00999999977 : f32
    %7 = vector.broadcast %cst_5 : f32 to vector<64x256xf32>
    %8 = arith.mulf %7, %6 : vector<64x256xf32>
    %9 = arith.maximumf %6, %8 : vector<64x256xf32>
    %10 = arith.truncf %9 : vector<64x256xf32> to vector<64x256xbf16>
    %c0_6 = arith.constant 0 : index
    %c0_7 = arith.constant 0 : index
    %11 = vector.load %arg4[%c0_6, %c0_7] : memref<256x128xbf16, #tpu.memory_space<vmem>>, vector<256x128xbf16>
    %cst_8 = arith.constant dense<0.000000e+00> : vector<64x128xf32>
    %12 = tpu.matmul %10, %11, %cst_8 {dimension_numbers = #tpu.dot_dimension_numbers<[1], [0], [0], [1], [0, 0, 1, 1], [], []>} : vector<64x256xbf16>, vector<256x128xbf16>, vector<64x128xf32> -> vector<64x128xf32>
    %c0_9 = arith.constant 0 : index
    %c0_10 = arith.constant 0 : index
    %13 = vector.load %arg5[%c0_9, %c0_10] : memref<1x128xf32, #tpu.memory_space<vmem>>, vector<1x128xf32>
    %14 = vector.broadcast %13 : vector<1x128xf32> to vector<64x128xf32>
    %15 = arith.addf %12, %14 : vector<64x128xf32>
    %cst_11 = arith.constant 0.00999999977 : f32
    %16 = vector.broadcast %cst_11 : f32 to vector<64x128xf32>
    %17 = arith.mulf %16, %15 : vector<64x128xf32>
    %18 = arith.maximumf %15, %17 : vector<64x128xf32>
    %19 = arith.truncf %18 : vector<64x128xf32> to vector<64x128xbf16>
    %c0_12 = arith.constant 0 : index
    %c0_13 = arith.constant 0 : index
    %20 = vector.load %arg6[%c0_12, %c0_13] : memref<128x128xbf16, #tpu.memory_space<vmem>>, vector<128x128xbf16>
    %cst_14 = arith.constant dense<0.000000e+00> : vector<64x128xf32>
    %21 = tpu.matmul %19, %20, %cst_14 {dimension_numbers = #tpu.dot_dimension_numbers<[1], [0], [0], [1], [0, 0, 1, 1], [], []>} : vector<64x128xbf16>, vector<128x128xbf16>, vector<64x128xf32> -> vector<64x128xf32>
    %c0_15 = arith.constant 0 : index
    %c0_16 = arith.constant 0 : index
    %22 = vector.load %arg7[%c0_15, %c0_16] : memref<1x128xf32, #tpu.memory_space<vmem>>, vector<1x128xf32>
    %23 = vector.broadcast %22 : vector<1x128xf32> to vector<64x128xf32>
    %24 = arith.addf %21, %23 : vector<64x128xf32>
    %cst_17 = arith.constant 0.00999999977 : f32
    %25 = vector.broadcast %cst_17 : f32 to vector<64x128xf32>
    %26 = arith.mulf %25, %24 : vector<64x128xf32>
    %27 = arith.maximumf %24, %26 : vector<64x128xf32>
    %28 = arith.truncf %27 : vector<64x128xf32> to vector<64x128xbf16>
    %c0_18 = arith.constant 0 : index
    %c0_19 = arith.constant 0 : index
    %29 = vector.load %arg8[%c0_18, %c0_19] : memref<128x128xbf16, #tpu.memory_space<vmem>>, vector<128x128xbf16>
    %cst_20 = arith.constant dense<0.000000e+00> : vector<64x128xf32>
    %30 = tpu.matmul %28, %29, %cst_20 {dimension_numbers = #tpu.dot_dimension_numbers<[1], [0], [0], [1], [0, 0, 1, 1], [], []>} : vector<64x128xbf16>, vector<128x128xbf16>, vector<64x128xf32> -> vector<64x128xf32>
    %c0_21 = arith.constant 0 : index
    %c0_22 = arith.constant 0 : index
    %31 = vector.load %arg9[%c0_21, %c0_22] : memref<1x128xf32, #tpu.memory_space<vmem>>, vector<1x128xf32>
    %32 = vector.broadcast %31 : vector<1x128xf32> to vector<64x128xf32>
    %33 = arith.addf %30, %32 : vector<64x128xf32>
    %cst_23 = arith.constant 0.00999999977 : f32
    %34 = vector.broadcast %cst_23 : f32 to vector<64x128xf32>
    %35 = arith.mulf %34, %33 : vector<64x128xf32>
    %36 = arith.maximumf %33, %35 : vector<64x128xf32>
    %37 = arith.truncf %36 : vector<64x128xf32> to vector<64x128xbf16>
    %c0_24 = arith.constant 0 : index
    %c0_25 = arith.constant 0 : index
    %38 = vector.load %arg10[%c0_24, %c0_25] : memref<128x128xbf16, #tpu.memory_space<vmem>>, vector<128x128xbf16>
    %cst_26 = arith.constant dense<0.000000e+00> : vector<64x128xf32>
    %39 = tpu.matmul %37, %38, %cst_26 {dimension_numbers = #tpu.dot_dimension_numbers<[1], [0], [0], [1], [0, 0, 1, 1], [], []>} : vector<64x128xbf16>, vector<128x128xbf16>, vector<64x128xf32> -> vector<64x128xf32>
    %c0_27 = arith.constant 0 : index
    %c0_28 = arith.constant 0 : index
    %40 = vector.load %arg11[%c0_27, %c0_28] : memref<1x128xf32, #tpu.memory_space<vmem>>, vector<1x128xf32>
    %41 = vector.broadcast %40 : vector<1x128xf32> to vector<64x128xf32>
    %42 = arith.addf %39, %41 : vector<64x128xf32>
    %43 = arith.truncf %42 : vector<64x128xf32> to vector<64x128xbf16>
    %c0_29 = arith.constant 0 : index
    %c0_30 = arith.constant 0 : index
    %44 = vector.load %arg12[%c0_29, %c0_30] : memref<64x128xbf16, #tpu.memory_space<vmem>>, vector<64x128xbf16>
    tpu.vector_store %arg12[%c0_29, %c0_30], %43 {strides = array<i32>} : memref<64x128xbf16, #tpu.memory_space<vmem>>, vector<64x128xbf16>,
    return
  }
  func.func @transform_0(%arg0: i32) -> (i32, i32) {
    %c0_i32 = arith.constant 0 : i32
    %c0_i32_0 = arith.constant 0 : i32
    return %arg0, %c0_i32 : i32, i32
  }
  func.func @transform_1(%arg0: i32) -> (i32, i32) {
    %c0_i32 = arith.constant 0 : i32
    %c0_i32_0 = arith.constant 0 : i32
    %c0_i32_1 = arith.constant 0 : i32
    return %c0_i32, %c0_i32_0 : i32, i32
  }
  func.func @transform_2(%arg0: i32) -> (i32, i32) {
    %c0_i32 = arith.constant 0 : i32
    %c0_i32_0 = arith.constant 0 : i32
    %c0_i32_1 = arith.constant 0 : i32
    return %c0_i32, %c0_i32_0 : i32, i32
  }
  func.func @transform_3(%arg0: i32) -> (i32, i32) {
    %c0_i32 = arith.constant 0 : i32
    %c0_i32_0 = arith.constant 0 : i32
    %c0_i32_1 = arith.constant 0 : i32
    return %c0_i32, %c0_i32_0 : i32, i32
  }
  func.func @transform_4(%arg0: i32) -> (i32, i32) {
    %c0_i32 = arith.constant 0 : i32
    %c0_i32_0 = arith.constant 0 : i32
    %c0_i32_1 = arith.constant 0 : i32
    return %c0_i32, %c0_i32_0 : i32, i32
  }
  func.func @transform_5(%arg0: i32) -> (i32, i32) {
    %c0_i32 = arith.constant 0 : i32
    %c0_i32_0 = arith.constant 0 : i32
    %c0_i32_1 = arith.constant 0 : i32
    return %c0_i32, %c0_i32_0 : i32, i32
  }
  func.func @transform_6(%arg0: i32) -> (i32, i32) {
    %c0_i32 = arith.constant 0 : i32
    %c0_i32_0 = arith.constant 0 : i32
    %c0_i32_1 = arith.constant 0 : i32
    return %c0_i32, %c0_i32_0 : i32, i32
  }
  func.func @transform_7(%arg0: i32) -> (i32, i32) {
    %c0_i32 = arith.constant 0 : i32
    %c0_i32_0 = arith.constant 0 : i32
    %c0_i32_1 = arith.constant 0 : i32
    return %c0_i32, %c0_i32_0 : i32, i32
  }
  func.func @transform_8(%arg0: i32) -> (i32, i32) {
    %c0_i32 = arith.constant 0 : i32
    %c0_i32_0 = arith.constant 0 : i32
    %c0_i32_1 = arith.constant 0 : i32
    return %c0_i32, %c0_i32_0 : i32, i32
  }
  func.func @transform_9(%arg0: i32) -> (i32, i32) {
    %c0_i32 = arith.constant 0 : i32
    %c0_i32_0 = arith.constant 0 : i32
    %c0_i32_1 = arith.constant 0 : i32
    return %c0_i32, %c0_i32_0 : i32, i32
  }
  func.func @transform_10(%arg0: i32) -> (i32, i32) {
    %c0_i32 = arith.constant 0 : i32
    %c0_i32_0 = arith.constant 0 : i32
    %c0_i32_1 = arith.constant 0 : i32
    return %c0_i32, %c0_i32_0 : i32, i32
  }
  func.func @transform_11(%arg0: i32) -> (i32, i32) {
    %c0_i32 = arith.constant 0 : i32
    %c0_i32_0 = arith.constant 0 : i32
    return %arg0, %c0_i32 : i32, i32
  }
}

</mosaic_0001>

<llo_original>
// kernel: deep_aero_net.1
$region0: #{deep_aero_net.1}
  #allocation0 [shape = 'u32[]', space=smem, size = 0x4, offset = 0x4, fixed_abs, tag = 'smem constant byte address 0x4 - core index']
  #allocation1 [shape = 'u32[72,128]{1,0:T(1,128)}', space=vmem, size = 0x9000, scoped, tag = 'internal scratch']
  %s0 = inlined_call_operand.vmem [shape: f32[256,20], index: 0, kind: input, shape index: {}]
  %s1 = inlined_call_operand.vmem [shape: bf16[20,256], index: 1, kind: input, shape index: {}]
  %s2 = inlined_call_operand.vmem [shape: f32[1,256], index: 2, kind: input, shape index: {}]
  %s3 = inlined_call_operand.vmem [shape: bf16[256,128], index: 3, kind: input, shape index: {}]
  %s4 = inlined_call_operand.vmem [shape: f32[1,128], index: 4, kind: input, shape index: {}]
  %s5 = inlined_call_operand.vmem [shape: bf16[128,128], index: 5, kind: input, shape index: {}]
  %s6 = inlined_call_operand.vmem [shape: f32[1,128], index: 6, kind: input, shape index: {}]
  %s7 = inlined_call_operand.vmem [shape: bf16[128,128], index: 7, kind: input, shape index: {}]
  %s8 = inlined_call_operand.vmem [shape: f32[1,128], index: 8, kind: input, shape index: {}]
  %s9 = inlined_call_operand.vmem [shape: bf16[128,128], index: 9, kind: input, shape index: {}]
  %s10 = inlined_call_operand.vmem [shape: f32[1,128], index: 10, kind: input, shape index: {}]
  %s11 = inlined_call_operand.vmem [shape: bf16[256,128], index: 11, kind: output, shape index: {}]
  %s12 = sld [smem:[#allocation0]]
  $region77: #{deep_aero_net.1} parent=0
    _
  %s14 = ssub.s32 1, %s12
  %s15 = scalar_select 0, %s14, %s12
  loop: start=0, step=1, limit=6
  $region2: #{deep_aero_net.1} parent=0 // loop_pre_header
    _
  $region3: #{deep_aero_net.1} parent=0 // loop_header
    %s17 = sphi 0, %s21
    %p18 = scmp.ge.s32.totalorder %s17, 6
    %s27 = sphi 0, %s29
    %s30 = sphi 0, %s27
    %s31 = sphi 0, %s30
    %s47 = sphi 0, %s31
    %s51 = sphi 0, %s51
    %s53 = sphi 0, %s51
    %s54 = sphi 0, %s53
    %s68 = sphi 0, %s54
    %s72 = sphi 0, %s72
    %s74 = sphi 0, %s72
    %s75 = sphi 0, %s74
    %s89 = sphi 0, %s75
    %s93 = sphi 0, %s93
    %s95 = sphi 0, %s93
    %s96 = sphi 0, %s95
    %s110 = sphi 0, %s96
    %s114 = sphi 0, %s114
    %s116 = sphi 0, %s114
    %s117 = sphi 0, %s116
    %s131 = sphi 0, %s117
    %s135 = sphi 0, %s135
    %s137 = sphi 0, %s135
    %s138 = sphi 0, %s137
    %s152 = sphi 0, %s138
    %s156 = sphi 0, %s156
    %s158 = sphi 0, %s156
    %s159 = sphi 0, %s158
    %s173 = sphi 0, %s159
    %s177 = sphi 0, %s177
    %s179 = sphi 0, %s177
    %s180 = sphi 0, %s179
    %s194 = sphi 0, %s180
    %s198 = sphi 0, %s198
    %s200 = sphi 0, %s198
    %s201 = sphi 0, %s200
    %s215 = sphi 0, %s201
    %s219 = sphi 0, %s219
    %s221 = sphi 0, %s219
    %s222 = sphi 0, %s221
    %s236 = sphi 0, %s222
    %s240 = sphi 0, %s240
    %s242 = sphi 0, %s240
    %s243 = sphi 0, %s242
    %s257 = sphi 0, %s243
    %s263 = sphi 0, %s265
    %s266 = sphi 0, %s263
    %s267 = sphi 0, %s266
    %s283 = sphi 0, %s267
  $region4: #{deep_aero_net.1} parent=0 // loop_header_branch
    %20 = sbr.rel (%p18) target = $region8
  $region5: #{deep_aero_net.1} parent=0 // loop_body
    %s22 = ssub.s32 %s17, 1
    %s23 = ssub.s32 %s17, 2
    %s24 = sadd.s32 %s17, 1
    %s25 = ssub.s32 %s17, %s24
    %p26 = scmp.eq.s32.totalorder %s25, 0
    %s28 = sadd.s32 %s27, 1
    %s29 = scalar_select %p26, %s27, %s28
    %p32 = pneg %p26
    %p33 = scmp.eq.s32.totalorder %s17, 3
    %p34 = por %p32, %p33
    %p35 = scmp.ne.s32.totalorder %s27, %s30
    %p36 = scmp.eq.s32.totalorder %s17, 0
    %p37 = por %p35, %p36
    %p38 = scmp.ne.s32.totalorder %s27, %s30
    %p39 = scmp.eq.s32.totalorder %s22, 3
    %p40 = por %p38, %p39
    %p41 = scmp.ne.s32.totalorder %s30, %s31
    %p42 = scmp.eq.s32.totalorder %s22, 0
    %p43 = por %p41, %p42
    %p44 = scmp.ne.s32.totalorder %s30, %s31
    %p45 = scmp.eq.s32.totalorder %s23, 3
    %p46 = por %p44, %p45
    %p48 = scmp.ne.s32.totalorder %s31, %s47
    %p49 = scmp.eq.s32.totalorder %s23, 0
    %p50 = por %p48, %p49
    %s52 = sadd.s32 %s51, 1
    %p55 = scmp.eq.s32.totalorder %s17, 3
    %p56 = scmp.ne.s32.totalorder %s51, %s53
    %p57 = scmp.eq.s32.totalorder %s17, 0
    %p58 = por %p56, %p57
    %p59 = scmp.ne.s32.totalorder %s51, %s53
    %p60 = scmp.eq.s32.totalorder %s22, 3
    %p61 = por %p59, %p60
    %p62 = scmp.ne.s32.totalorder %s53, %s54
    %p63 = scmp.eq.s32.totalorder %s22, 0
    %p64 = por %p62, %p63
    %p65 = scmp.ne.s32.totalorder %s53, %s54
    %p66 = scmp.eq.s32.totalorder %s23, 3
    %p67 = por %p65, %p66
    %p69 = scmp.ne.s32.totalorder %s54, %s68
    %p70 = scmp.eq.s32.totalorder %s23, 0
    %p71 = por %p69, %p70
    %s73 = sadd.s32 %s72, 1
    %p76 = scmp.eq.s32.totalorder %s17, 3
    %p77 = scmp.ne.s32.totalorder %s72, %s74
    %p78 = scmp.eq.s32.totalorder %s17, 0
    %p79 = por %p77, %p78
    %p80 = scmp.ne.s32.totalorder %s72, %s74
    %p81 = scmp.eq.s32.totalorder %s22, 3
    %p82 = por %p80, %p81
    %p83 = scmp.ne.s32.totalorder %s74, %s75
    %p84 = scmp.eq.s32.totalorder %s22, 0
    %p85 = por %p83, %p84
    %p86 = scmp.ne.s32.totalorder %s74, %s75
    %p87 = scmp.eq.s32.totalorder %s23, 3
    %p88 = por %p86, %p87
    %p90 = scmp.ne.s32.totalorder %s75, %s89
    %p91 = scmp.eq.s32.totalorder %s23, 0
    %p92 = por %p90, %p91
    %s94 = sadd.s32 %s93, 1
    %p97 = scmp.eq.s32.totalorder %s17, 3
    %p98 = scmp.ne.s32.totalorder %s93, %s95
    %p99 = scmp.eq.s32.totalorder %s17, 0
    %p100 = por %p98, %p99
    %p101 = scmp.ne.s32.totalorder %s93, %s95
    %p102 = scmp.eq.s32.totalorder %s22, 3
    %p103 = por %p101, %p102
    %p104 = scmp.ne.s32.totalorder %s95, %s96
    %p105 = scmp.eq.s32.totalorder %s22, 0
    %p106 = por %p104, %p105
    %p107 = scmp.ne.s32.totalorder %s95, %s96
    %p108 = scmp.eq.s32.totalorder %s23, 3
    %p109 = por %p107, %p108
    %p111 = scmp.ne.s32.totalorder %s96, %s110
    %p112 = scmp.eq.s32.totalorder %s23, 0
    %p113 = por %p111, %p112
    %s115 = sadd.s32 %s114, 1
    %p118 = scmp.eq.s32.totalorder %s17, 3
    %p119 = scmp.ne.s32.totalorder %s114, %s116
    %p120 = scmp.eq.s32.totalorder %s17, 0
    %p121 = por %p119, %p120
    %p122 = scmp.ne.s32.totalorder %s114, %s116
    %p123 = scmp.eq.s32.totalorder %s22, 3
    %p124 = por %p122, %p123
    %p125 = scmp.ne.s32.totalorder %s116, %s117
    %p126 = scmp.eq.s32.totalorder %s22, 0
    %p127 = por %p125, %p126
    %p128 = scmp.ne.s32.totalorder %s116, %s117
    %p129 = scmp.eq.s32.totalorder %s23, 3
    %p130 = por %p128, %p129
    %p132 = scmp.ne.s32.totalorder %s117, %s131
    %p133 = scmp.eq.s32.totalorder %s23, 0
    %p134 = por %p132, %p133
    %s136 = sadd.s32 %s135, 1
    %p139 = scmp.eq.s32.totalorder %s17, 3
    %p140 = scmp.ne.s32.totalorder %s135, %s137
    %p141 = scmp.eq.s32.totalorder %s17, 0
    %p142 = por %p140, %p141
    %p143 = scmp.ne.s32.totalorder %s135, %s137
    %p144 = scmp.eq.s32.totalorder %s22, 3
    %p145 = por %p143, %p144
    %p146 = scmp.ne.s32.totalorder %s137, %s138
    %p147 = scmp.eq.s32.totalorder %s22, 0
    %p148 = por %p146, %p147
    %p149 = scmp.ne.s32.totalorder %s137, %s138
    %p150 = scmp.eq.s32.totalorder %s23, 3
    %p151 = por %p149, %p150
    %p153 = scmp.ne.s32.totalorder %s138, %s152
    %p154 = scmp.eq.s32.totalorder %s23, 0
    %p155 = por %p153, %p154
    %s157 = sadd.s32 %s156, 1
    %p160 = scmp.eq.s32.totalorder %s17, 3
    %p161 = scmp.ne.s32.totalorder %s156, %s158
    %p162 = scmp.eq.s32.totalorder %s17, 0
    %p163 = por %p161, %p162
    %p164 = scmp.ne.s32.totalorder %s156, %s158
    %p165 = scmp.eq.s32.totalorder %s22, 3
    %p166 = por %p164, %p165
    %p167 = scmp.ne.s32.totalorder %s158, %s159
    %p168 = scmp.eq.s32.totalorder %s22, 0
    %p169 = por %p167, %p168
    %p170 = scmp.ne.s32.totalorder %s158, %s159
    %p171 = scmp.eq.s32.totalorder %s23, 3
    %p172 = por %p170, %p171
    %p174 = scmp.ne.s32.totalorder %s159, %s173
    %p175 = scmp.eq.s32.totalorder %s23, 0
    %p176 = por %p174, %p175
    %s178 = sadd.s32 %s177, 1
    %p181 = scmp.eq.s32.totalorder %s17, 3
    %p182 = scmp.ne.s32.totalorder %s177, %s179
    %p183 = scmp.eq.s32.totalorder %s17, 0
    %p184 = por %p182, %p183
    %p185 = scmp.ne.s32.totalorder %s177, %s179
    %p186 = scmp.eq.s32.totalorder %s22, 3
    %p187 = por %p185, %p186
    %p188 = scmp.ne.s32.totalorder %s179, %s180
    %p189 = scmp.eq.s32.totalorder %s22, 0
    %p190 = por %p188, %p189
    %p191 = scmp.ne.s32.totalorder %s179, %s180
    %p192 = scmp.eq.s32.totalorder %s23, 3
    %p193 = por %p191, %p192
    %p195 = scmp.ne.s32.totalorder %s180, %s194
    %p196 = scmp.eq.s32.totalorder %s23, 0
    %p197 = por %p195, %p196
    %s199 = sadd.s32 %s198, 1
    %p202 = scmp.eq.s32.totalorder %s17, 3
    %p203 = scmp.ne.s32.totalorder %s198, %s200
    %p204 = scmp.eq.s32.totalorder %s17, 0
    %p205 = por %p203, %p204
    %p206 = scmp.ne.s32.totalorder %s198, %s200
    %p207 = scmp.eq.s32.totalorder %s22, 3
    %p208 = por %p206, %p207
    %p209 = scmp.ne.s32.totalorder %s200, %s201
    %p210 = scmp.eq.s32.totalorder %s22, 0
    %p211 = por %p209, %p210
    %p212 = scmp.ne.s32.totalorder %s200, %s201
    %p213 = scmp.eq.s32.totalorder %s23, 3
    %p214 = por %p212, %p213
    %p216 = scmp.ne.s32.totalorder %s201, %s215
    %p217 = scmp.eq.s32.totalorder %s23, 0
    %p218 = por %p216, %p217
    %s220 = sadd.s32 %s219, 1
    %p223 = scmp.eq.s32.totalorder %s17, 3
    %p224 = scmp.ne.s32.totalorder %s219, %s221
    %p225 = scmp.eq.s32.totalorder %s17, 0
    %p226 = por %p224, %p225
    %p227 = scmp.ne.s32.totalorder %s219, %s221
    %p228 = scmp.eq.s32.totalorder %s22, 3
    %p229 = por %p227, %p228
    %p230 = scmp.ne.s32.totalorder %s221, %s222
    %p231 = scmp.eq.s32.totalorder %s22, 0
    %p232 = por %p230, %p231
    %p233 = scmp.ne.s32.totalorder %s221, %s222
    %p234 = scmp.eq.s32.totalorder %s23, 3
    %p235 = por %p233, %p234
    %p237 = scmp.ne.s32.totalorder %s222, %s236
    %p238 = scmp.eq.s32.totalorder %s23, 0
    %p239 = por %p237, %p238
    %s241 = sadd.s32 %s240, 1
    %p244 = scmp.eq.s32.totalorder %s17, 3
    %p245 = scmp.ne.s32.totalorder %s240, %s242
    %p246 = scmp.eq.s32.totalorder %s17, 0
    %p247 = por %p245, %p246
    %p248 = scmp.ne.s32.totalorder %s240, %s242
    %p249 = scmp.eq.s32.totalorder %s22, 3
    %p250 = por %p248, %p249
    %p251 = scmp.ne.s32.totalorder %s242, %s243
    %p252 = scmp.eq.s32.totalorder %s22, 0
    %p253 = por %p251, %p252
    %p254 = scmp.ne.s32.totalorder %s242, %s243
    %p255 = scmp.eq.s32.totalorder %s23, 3
    %p256 = por %p254, %p255
    %p258 = scmp.ne.s32.totalorder %s243, %s257
    %p259 = scmp.eq.s32.totalorder %s23, 0
    %p260 = por %p258, %p259
    %s261 = ssub.s32 %s17, %s24
    %p262 = scmp.eq.s32.totalorder %s261, 0
    %s264 = sadd.s32 %s263, 1
    %s265 = scalar_select %p262, %s263, %s264
    %p268 = pneg %p262
    %p269 = scmp.eq.s32.totalorder %s17, 3
    %p270 = por %p268, %p269
    %p271 = scmp.ne.s32.totalorder %s263, %s266
    %p272 = scmp.eq.s32.totalorder %s17, 0
    %p273 = por %p271, %p272
    %p274 = scmp.ne.s32.totalorder %s263, %s266
    %p275 = scmp.eq.s32.totalorder %s22, 3
    %p276 = por %p274, %p275
    %p277 = scmp.ne.s32.totalorder %s266, %s267
    %p278 = scmp.eq.s32.totalorder %s22, 0
    %p279 = por %p277, %p278
    %p280 = scmp.ne.s32.totalorder %s266, %s267
    %p281 = scmp.eq.s32.totalorder %s23, 3
    %p282 = por %p280, %p281
    %p284 = scmp.ne.s32.totalorder %s267, %s283
    %p285 = scmp.eq.s32.totalorder %s23, 0
    %p286 = por %p284, %p285
    %p287 = scmp.le.s32.totalorder 1, %s17
    %p288 = scmp.lt.s32.totalorder %s17, 5
    %p289 = pnand %p287, %p288
    %p290 = pneg %p289
    // Predicated region
    $region9: #{deep_aero_net.1} parent=5 // pred_check
      _
    $region10: #{deep_aero_net.1} parent=5 // pred_check_branch
      %292 = sbr.rel (%p289) target = $region12
    $region11: #{deep_aero_net.1} parent=5 // pred_region
      %s293 = ssub.s32 %s17, 1
      // Predicated region
      $region13: #{deep_aero_net.1} parent=11 // pred_check
        %p294 = pneg %p64
      $region14: #{deep_aero_net.1} parent=11 // pred_check_branch
        %296 = sbr.rel (%p294) target = $region16
      $region15: #{deep_aero_net.1} parent=11 // pred_region
        _
      $region16: #{deep_aero_net.1} parent=11 // pred_fallthru
        _
      // Predicated region
      $region17: #{deep_aero_net.1} parent=11 // pred_check
        %p297 = pneg %p85
      $region18: #{deep_aero_net.1} parent=11 // pred_check_branch
        %299 = sbr.rel (%p297) target = $region20
      $region19: #{deep_aero_net.1} parent=11 // pred_region
        _
      $region20: #{deep_aero_net.1} parent=11 // pred_fallthru
        _
      // Predicated region
      $region21: #{deep_aero_net.1} parent=11 // pred_check
        %p300 = pneg %p106
      $region22: #{deep_aero_net.1} parent=11 // pred_check_branch
        %302 = sbr.rel (%p300) target = $region24
      $region23: #{deep_aero_net.1} parent=11 // pred_region
        _
      $region24: #{deep_aero_net.1} parent=11 // pred_fallthru
        _
      // Predicated region
      $region25: #{deep_aero_net.1} parent=11 // pred_check
        %p303 = pneg %p127
      $region26: #{deep_aero_net.1} parent=11 // pred_check_branch
        %305 = sbr.rel (%p303) target = $region28
      $region27: #{deep_aero_net.1} parent=11 // pred_region
        _
      $region28: #{deep_aero_net.1} parent=11 // pred_fallthru
        _
      // Predicated region
      $region29: #{deep_aero_net.1} parent=11 // pred_check
        %p306 = pneg %p148
      $region30: #{deep_aero_net.1} parent=11 // pred_check_branch
        %308 = sbr.rel (%p306) target = $region32
      $region31: #{deep_aero_net.1} parent=11 // pred_region
        _
      $region32: #{deep_aero_net.1} parent=11 // pred_fallthru
        _
      // Predicated region
      $region33: #{deep_aero_net.1} parent=11 // pred_check
        %p309 = pneg %p169
      $region34: #{deep_aero_net.1} parent=11 // pred_check_branch
        %311 = sbr.rel (%p309) target = $region36
      $region35: #{deep_aero_net.1} parent=11 // pred_region
        _
      $region36: #{deep_aero_net.1} parent=11 // pred_fallthru
        _
      // Predicated region
      $region37: #{deep_aero_net.1} parent=11 // pred_check
        %p312 = pneg %p190
      $region38: #{deep_aero_net.1} parent=11 // pred_check_branch
        %314 = sbr.rel (%p312) target = $region40
      $region39: #{deep_aero_net.1} parent=11 // pred_region
        _
      $region40: #{deep_aero_net.1} parent=11 // pred_fallthru
        _
      // Predicated region
      $region41: #{deep_aero_net.1} parent=11 // pred_check
        %p315 = pneg %p211
      $region42: #{deep_aero_net.1} parent=11 // pred_check_branch
        %317 = sbr.rel (%p315) target = $region44
      $region43: #{deep_aero_net.1} parent=11 // pred_region
        _
      $region44: #{deep_aero_net.1} parent=11 // pred_fallthru
        _
      // Predicated region
      $region45: #{deep_aero_net.1} parent=11 // pred_check
        %p318 = pneg %p232
      $region46: #{deep_aero_net.1} parent=11 // pred_check_branch
        %320 = sbr.rel (%p318) target = $region48
      $region47: #{deep_aero_net.1} parent=11 // pred_region
        _
      $region48: #{deep_aero_net.1} parent=11 // pred_fallthru
        _
      // Predicated region
      $region49: #{deep_aero_net.1} parent=11 // pred_check
        %p321 = pneg %p253
      $region50: #{deep_aero_net.1} parent=11 // pred_check_branch
        %323 = sbr.rel (%p321) target = $region52
      $region51: #{deep_aero_net.1} parent=11 // pred_region
        _
      $region52: #{deep_aero_net.1} parent=11 // pred_fallthru
        _
    $region12: #{deep_aero_net.1} parent=5 // pred_fallthru
      _
    %p324 = scmp.lt.s32.totalorder %s17, 4
    // Predicated region
    $region53: #{deep_aero_net.1} parent=5 // pred_check
      %p325 = pneg %p324
    $region54: #{deep_aero_net.1} parent=5 // pred_check_branch
      %327 = sbr.rel (%p325) target = $region56
    $region55: #{deep_aero_net.1} parent=5 // pred_region
      // Predicated region
      $region57: #{deep_aero_net.1} parent=55 // pred_check
        %p328 = pneg %p37
      $region58: #{deep_aero_net.1} parent=55 // pred_check_branch
        %330 = sbr.rel (%p328) target = $region60
      $region59: #{deep_aero_net.1} parent=55 // pred_region
        %s331 = smul.u32 8, %s17
        %p332 = scmp.lt.s32.totalorder %s331, 31
        %s333 = scalar_select %p332, %s331, 31
        %s334 = smul.addr %s333, 8
        %s335 = scalar_lea.vmem %s0, %s334
        %s336 = smul.u32 8, %s17
      $region60: #{deep_aero_net.1} parent=55 // pred_fallthru
        _
    $region56: #{deep_aero_net.1} parent=5 // pred_fallthru
      _
    %p337 = scmp.le.s32.totalorder 1, %s17
    %p338 = scmp.lt.s32.totalorder %s17, 5
    %p339 = pnand %p337, %p338
    %p340 = pneg %p339
    // Predicated region
    $region61: #{deep_aero_net.1} parent=5 // pred_check
      _
    $region62: #{deep_aero_net.1} parent=5 // pred_check_branch
      %342 = sbr.rel (%p339) target = $region64
    $region63: #{deep_aero_net.1} parent=5 // pred_region
      %s343 = ssub.s32 %s17, 1
      %s344 = smul.u32 8, %s22
      %p345 = scmp.lt.s32.totalorder %s344, 31
      %s346 = scalar_select %p345, %s344, 31
      %s347 = smul.addr %s346, 8
      %s348 = scalar_lea.vmem %s0, %s347
      %p349 = pneg %p43
      %p350 = pneg %p40
      %p351 = pneg %p64
      %p352 = pneg %p61
      %p353 = pneg %p85
      %p354 = pneg %p82
      %p355 = pneg %p106
      %p356 = pneg %p103
      %p357 = pneg %p127
      %p358 = pneg %p124
      %p359 = pneg %p148
      %p360 = pneg %p145
      %p361 = pneg %p169
      %p362 = pneg %p166
      %p363 = pneg %p190
      %p364 = pneg %p187
      %p365 = pneg %p211
      %p366 = pneg %p208
      %p367 = pneg %p232
      %p368 = pneg %p229
      %p369 = pneg %p253
      %p370 = pneg %p250
      %p371 = pneg %p279
      %p372 = pneg %p276
      %s373 = smul.u32 8, %s22
      %p374 = scmp.lt.s32.totalorder %s373, 31
      %s375 = scalar_select %p374, %s373, 31
      %s376 = smul.addr %s375, 4
      %s377 = scalar_lea.vmem %s11, %s376
      %s378 = smul.u32 8, %s22
      %p379 = scmp.lt.s32.totalorder %s378, 31
      %s380 = scalar_select %p379, %s378, 31
      %s381 = smul.addr %s380, 8
      %s382 = scalar_lea.vmem %s0, %s381
      %s383 = smul.u32 8, %s22
      %s384 = smul.u32 8, %s22
      %p385 = scmp.lt.s32.totalorder %s384, 31
      %s386 = scalar_select %p385, %s384, 31
      %s387 = smul.addr %s386, 4
      %s388 = scalar_lea.vmem %s11, %s387
      %s389 = smul.u32 8, %s22
      %v391 = vld [vmem:[%s382] sm:$0xff]
      %v392 = vld [vmem:[%s382 + $0x8] sm:$0xff]
      %v393 = vld [vmem:[%s382 + $0x10] sm:$0xff]
      %v394 = vld [vmem:[%s382 + $0x18] sm:$0xff]
      %v395 = vld [vmem:[%s382 + $0x20] sm:$0xff]
      %v396 = vld [vmem:[%s382 + $0x28] sm:$0xff]
      %v397 = vld [vmem:[%s382 + $0x30] sm:$0xff]
      %v398 = vld [vmem:[%s382 + $0x38] sm:$0xff]
      %v399 = vpack.c.bf16 %v392, %v391
      %v400 = vpack.c.bf16 %v394, %v393
      %v401 = vpack.c.bf16 %v396, %v395
      %v402 = vpack.c.bf16 %v398, %v397
      %v403 = vld [vmem:[%s1] sm:$0xff]
      %v404 = vld [vmem:[%s1 + $0x8] sm:$0xff]
      %v405 = vld [vmem:[%s1 + $0x10] sm:$0x33]
      %v406 = vld [vmem:[%s2] sm:$0x3]
      %v408 = vperm.slane %v406, 0
      %v409 = vperm.slane %v406, 1
      %v415 = vunpack.c.l.b16 %v403
      %v416 = vunpack.c.h.b16 %v403
      %v417 = vunpack.c.l.b16 %v404
      %v418 = vunpack.c.h.b16 %v404
      %v419 = vunpack.c.l.b16 %v405
      %v420 = vunpack.c.h.b16 %v405
      %v421 = vpack.c.b16 %v417, %v415
      %v422 = vpack.c.b16 %v418, %v416
      %v423 = vpack.c.b16 %v419, %v419
      %v424 = vpack.c.b16 %v420, %v420
      %vm427 = vcmask 162816
      %v429 = vsel %vm427, %v399, 0
      %v432 = vsel %vm427, %v400, 0
      %v435 = vsel %vm427, %v401, 0
      %v438 = vsel %vm427, %v402, 0
      %vm440 = vcmask 1041408
      %v442 = vsel %vm440, %v423, 0
      %v445 = vsel %vm440, %v424, 0
      %447 = vmatpush.bf16.msra.mxu0 0
      %448 = vmatpush.bf16.msra.mxu0 0
      %449 = vmatpush.bf16.msra.mxu0 0
      %450 = vmatpush.bf16.msra.mxu0 0
      %451 = vmatpush.bf16.msra.mxu0 0
      %452 = vmatpush.bf16.msra.mxu0 0
      %453 = vmatpush.bf16.msra.mxu0 %v442
      %454 = vmatpush.bf16.msra.mxu0 %v421
      %455 = vmatmul.bf16.gmra.mxu0 %v429
      %v456 = vpop.f32.mrf.mxu0
      %v457 = vadd.f32 %v408, %v456
      %v458 = vpop.f32.mrf.mxu0
      %v459 = vadd.f32 %v408, %v458
      %460 = vmatmul.bf16.gmra.mxu0 %v432
      %v461 = vpop.f32.mrf.mxu0
      %v462 = vadd.f32 %v408, %v461
      %v463 = vpop.f32.mrf.mxu0
      %v464 = vadd.f32 %v408, %v463
      %465 = vmatmul.bf16.gmra.mxu0 %v435
      %v466 = vpop.f32.mrf.mxu0
      %v467 = vadd.f32 %v408, %v466
      %v468 = vpop.f32.mrf.mxu0
      %v469 = vadd.f32 %v408, %v468
      %470 = vmatmul.bf16.gmra.mxu0 %v438
      %v471 = vpop.f32.mrf.mxu0
      %v472 = vadd.f32 %v408, %v471
      %v473 = vpop.f32.mrf.mxu0
      %v474 = vadd.f32 %v408, %v473
      %475 = vdwg.mxu0
      %476 = vmatpush.bf16.msra.mxu0 0
      %477 = vmatpush.bf16.msra.mxu0 0
      %478 = vmatpush.bf16.msra.mxu0 0
      %479 = vmatpush.bf16.msra.mxu0 0
      %480 = vmatpush.bf16.msra.mxu0 0
      %481 = vmatpush.bf16.msra.mxu0 0
      %482 = vmatpush.bf16.msra.mxu0 %v445
      %483 = vmatpush.bf16.msra.mxu0 %v422
      %484 = vmatmul.bf16.gmra.mxu0 %v429
      %v485 = vpop.f32.mrf.mxu0
      %v486 = vadd.f32 %v409, %v485
      %v487 = vpop.f32.mrf.mxu0
      %v488 = vadd.f32 %v409, %v487
      %489 = vmatmul.bf16.gmra.mxu0 %v432
      %v490 = vpop.f32.mrf.mxu0
      %v491 = vadd.f32 %v409, %v490
      %v492 = vpop.f32.mrf.mxu0
      %v493 = vadd.f32 %v409, %v492
      %494 = vmatmul.bf16.gmra.mxu0 %v435
      %v495 = vpop.f32.mrf.mxu0
      %v496 = vadd.f32 %v409, %v495
      %v497 = vpop.f32.mrf.mxu0
      %v498 = vadd.f32 %v409, %v497
      %499 = vmatmul.bf16.gmra.mxu0 %v438
      %v500 = vpop.f32.mrf.mxu0
      %v501 = vadd.f32 %v409, %v500
      %v502 = vpop.f32.mrf.mxu0
      %v503 = vadd.f32 %v409, %v502
      %504 = vdwg.mxu0
      %v505 = vmul.f32 %v457, 0.01
      %v506 = vmul.f32 %v486, 0.01
      %v507 = vmul.f32 %v459, 0.01
      %v508 = vmul.f32 %v488, 0.01
      %v509 = vmul.f32 %v462, 0.01
      %v510 = vmul.f32 %v491, 0.01
      %v511 = vmul.f32 %v464, 0.01
      %v512 = vmul.f32 %v493, 0.01
      %v513 = vmul.f32 %v467, 0.01
      %v514 = vmul.f32 %v496, 0.01
      %v515 = vmul.f32 %v469, 0.01
      %v516 = vmul.f32 %v498, 0.01
      %v517 = vmul.f32 %v472, 0.01
      %v518 = vmul.f32 %v501, 0.01
      %v519 = vmul.f32 %v474, 0.01
      %v520 = vmul.f32 %v503, 0.01
      %v521 = vmax.f32 %v457, %v505
      %v522 = vmax.f32 %v486, %v506
      %v523 = vmax.f32 %v459, %v507
      %v524 = vmax.f32 %v488, %v508
      %v525 = vmax.f32 %v462, %v509
      %v526 = vmax.f32 %v491, %v510
      %v527 = vmax.f32 %v464, %v511
      %v528 = vmax.f32 %v493, %v512
      %v529 = vmax.f32 %v467, %v513
      %v530 = vmax.f32 %v496, %v514
      %v531 = vmax.f32 %v469, %v515
      %v532 = vmax.f32 %v498, %v516
      %v533 = vmax.f32 %v472, %v517
      %v534 = vmax.f32 %v501, %v518
      %v535 = vmax.f32 %v474, %v519
      %v536 = vmax.f32 %v503, %v520
      %v537 = vpack.c.bf16 %v523, %v521
      %v538 = vpack.c.bf16 %v524, %v522
      %v539 = vpack.c.bf16 %v527, %v525
      %v540 = vpack.c.bf16 %v528, %v526
      %v541 = vpack.c.bf16 %v531, %v529
      %v542 = vpack.c.bf16 %v532, %v530
      %v543 = vpack.c.bf16 %v535, %v533
      %v544 = vpack.c.bf16 %v536, %v534
      %v545 = vld [vmem:[%s3] sm:$0xf]
      %v546 = vld [vmem:[%s3 + $0x4] sm:$0xf]
      %v547 = vld [vmem:[%s3 + $0x8] sm:$0xf]
      %v548 = vld [vmem:[%s3 + $0xc] sm:$0xf]
      %v549 = vld [vmem:[%s3 + $0x10] sm:$0xf]
      %v550 = vld [vmem:[%s3 + $0x14] sm:$0xf]
      %v551 = vld [vmem:[%s3 + $0x18] sm:$0xf]
      %v552 = vld [vmem:[%s3 + $0x1c] sm:$0xf]
      %v553 = vld [vmem:[%s3 + $0x20] sm:$0xf]
      %v554 = vld [vmem:[%s3 + $0x24] sm:$0xf]
      %v555 = vld [vmem:[%s3 + $0x28] sm:$0xf]
      %v556 = vld [vmem:[%s3 + $0x2c] sm:$0xf]
      %v557 = vld [vmem:[%s3 + $0x30] sm:$0xf]
      %v558 = vld [vmem:[%s3 + $0x34] sm:$0xf]
      %v559 = vld [vmem:[%s3 + $0x38] sm:$0xf]
      %v560 = vld [vmem:[%s3 + $0x3c] sm:$0xf]
      %v561 = vld [vmem:[%s3 + $0x40] sm:$0xf]
      %v562 = vld [vmem:[%s3 + $0x44] sm:$0xf]
      %v563 = vld [vmem:[%s3 + $0x48] sm:$0xf]
      %v564 = vld [vmem:[%s3 + $0x4c] sm:$0xf]
      %v565 = vld [vmem:[%s3 + $0x50] sm:$0xf]
      %v566 = vld [vmem:[%s3 + $0x54] sm:$0xf]
      %v567 = vld [vmem:[%s3 + $0x58] sm:$0xf]
      %v568 = vld [vmem:[%s3 + $0x5c] sm:$0xf]
      %v569 = vld [vmem:[%s3 + $0x60] sm:$0xf]
      %v570 = vld [vmem:[%s3 + $0x64] sm:$0xf]
      %v571 = vld [vmem:[%s3 + $0x68] sm:$0xf]
      %v572 = vld [vmem:[%s3 + $0x6c] sm:$0xf]
      %v573 = vld [vmem:[%s3 + $0x70] sm:$0xf]
      %v574 = vld [vmem:[%s3 + $0x74] sm:$0xf]
      %v575 = vld [vmem:[%s3 + $0x78] sm:$0xf]
      %v576 = vld [vmem:[%s3 + $0x7c] sm:$0xf]
      %v577 = vld [vmem:[%s4] sm:$0x1]
      %v579 = vperm.slane %v577, 0
      %v613 = vunpack.c.l.b16 %v545
      %v614 = vunpack.c.l.b16 %v546
      %v615 = vunpack.c.l.b16 %v547
      %v616 = vunpack.c.l.b16 %v548
      %v617 = vunpack.c.l.b16 %v549
      %v618 = vunpack.c.l.b16 %v550
      %v619 = vunpack.c.l.b16 %v551
      %v620 = vunpack.c.l.b16 %v552
      %v621 = vunpack.c.l.b16 %v553
      %v622 = vunpack.c.l.b16 %v554
      %v623 = vunpack.c.l.b16 %v555
      %v624 = vunpack.c.l.b16 %v556
      %v625 = vunpack.c.l.b16 %v557
      %v626 = vunpack.c.l.b16 %v558
      %v627 = vunpack.c.l.b16 %v559
      %v628 = vunpack.c.l.b16 %v560
      %v629 = vunpack.c.l.b16 %v561
      %v630 = vunpack.c.l.b16 %v562
      %v631 = vunpack.c.l.b16 %v563
      %v632 = vunpack.c.l.b16 %v564
      %v633 = vunpack.c.l.b16 %v565
      %v634 = vunpack.c.l.b16 %v566
      %v635 = vunpack.c.l.b16 %v567
      %v636 = vunpack.c.l.b16 %v568
      %v637 = vunpack.c.l.b16 %v569
      %v638 = vunpack.c.l.b16 %v570
      %v639 = vunpack.c.l.b16 %v571
      %v640 = vunpack.c.l.b16 %v572
      %v641 = vunpack.c.l.b16 %v573
      %v642 = vunpack.c.l.b16 %v574
      %v643 = vunpack.c.l.b16 %v575
      %v644 = vunpack.c.l.b16 %v576
      %v645 = vpack.c.b16 %v614, %v613
      %v646 = vpack.c.b16 %v616, %v615
      %v647 = vpack.c.b16 %v618, %v617
      %v648 = vpack.c.b16 %v620, %v619
      %v649 = vpack.c.b16 %v622, %v621
      %v650 = vpack.c.b16 %v624, %v623
      %v651 = vpack.c.b16 %v626, %v625
      %v652 = vpack.c.b16 %v628, %v627
      %v653 = vpack.c.b16 %v630, %v629
      %v654 = vpack.c.b16 %v632, %v631
      %v655 = vpack.c.b16 %v634, %v633
      %v656 = vpack.c.b16 %v636, %v635
      %v657 = vpack.c.b16 %v638, %v637
      %v658 = vpack.c.b16 %v640, %v639
      %v659 = vpack.c.b16 %v642, %v641
      %v660 = vpack.c.b16 %v644, %v643
      %677 = vmatpush.bf16.msra.mxu0 %v652
      %678 = vmatpush.bf16.msra.mxu0 %v651
      %679 = vmatpush.bf16.msra.mxu0 %v650
      %680 = vmatpush.bf16.msra.mxu0 %v649
      %681 = vmatpush.bf16.msra.mxu0 %v648
      %682 = vmatpush.bf16.msra.mxu0 %v647
      %683 = vmatpush.bf16.msra.mxu0 %v646
      %684 = vmatpush.bf16.msra.mxu0 %v645
      %685 = vmatmul.bf16.gmra.mxu0 %v537
      %v686 = vpop.f32.mrf.mxu0
      %v687 = vadd.f32 %v579, %v686
      %v688 = vpop.f32.mrf.mxu0
      %v689 = vadd.f32 %v579, %v688
      %690 = vmatmul.bf16.gmra.mxu0 %v539
      %v691 = vpop.f32.mrf.mxu0
      %v692 = vadd.f32 %v579, %v691
      %v693 = vpop.f32.mrf.mxu0
      %v694 = vadd.f32 %v579, %v693
      %695 = vmatmul.bf16.gmra.mxu0 %v541
      %v696 = vpop.f32.mrf.mxu0
      %v697 = vadd.f32 %v579, %v696
      %v698 = vpop.f32.mrf.mxu0
      %v699 = vadd.f32 %v579, %v698
      %700 = vmatmul.bf16.gmra.mxu0 %v543
      %v701 = vpop.f32.mrf.mxu0
      %v702 = vadd.f32 %v579, %v701
      %v703 = vpop.f32.mrf.mxu0
      %v704 = vadd.f32 %v579, %v703
      %705 = vdwg.mxu0
      %706 = vmatpush.bf16.msra.mxu0 %v660
      %707 = vmatpush.bf16.msra.mxu0 %v659
      %708 = vmatpush.bf16.msra.mxu0 %v658
      %709 = vmatpush.bf16.msra.mxu0 %v657
      %710 = vmatpush.bf16.msra.mxu0 %v656
      %711 = vmatpush.bf16.msra.mxu0 %v655
      %712 = vmatpush.bf16.msra.mxu0 %v654
      %713 = vmatpush.bf16.msra.mxu0 %v653
      %714 = vmatmul.bf16.gmra.mxu0 %v538
      %v715 = vpop.f32.mrf.mxu0
      %v716 = vadd.f32 %v687, %v715
      %v717 = vpop.f32.mrf.mxu0
      %v718 = vadd.f32 %v689, %v717
      %719 = vmatmul.bf16.gmra.mxu0 %v540
      %v720 = vpop.f32.mrf.mxu0
      %v721 = vadd.f32 %v692, %v720
      %v722 = vpop.f32.mrf.mxu0
      %v723 = vadd.f32 %v694, %v722
      %724 = vmatmul.bf16.gmra.mxu0 %v542
      %v725 = vpop.f32.mrf.mxu0
      %v726 = vadd.f32 %v697, %v725
      %v727 = vpop.f32.mrf.mxu0
      %v728 = vadd.f32 %v699, %v727
      %729 = vmatmul.bf16.gmra.mxu0 %v544
      %v730 = vpop.f32.mrf.mxu0
      %v731 = vadd.f32 %v702, %v730
      %v732 = vpop.f32.mrf.mxu0
      %v733 = vadd.f32 %v704, %v732
      %734 = vdwg.mxu0
      %v735 = vmul.f32 %v716, 0.01
      %v736 = vmul.f32 %v718, 0.01
      %v737 = vmul.f32 %v721, 0.01
      %v738 = vmul.f32 %v723, 0.01
      %v739 = vmul.f32 %v726, 0.01
      %v740 = vmul.f32 %v728, 0.01
      %v741 = vmul.f32 %v731, 0.01
      %v742 = vmul.f32 %v733, 0.01
      %v743 = vmax.f32 %v716, %v735
      %v744 = vmax.f32 %v718, %v736
      %v745 = vmax.f32 %v721, %v737
      %v746 = vmax.f32 %v723, %v738
      %v747 = vmax.f32 %v726, %v739
      %v748 = vmax.f32 %v728, %v740
      %v749 = vmax.f32 %v731, %v741
      %v750 = vmax.f32 %v733, %v742
      %v751 = vpack.c.bf16 %v744, %v743
      %v752 = vpack.c.bf16 %v746, %v745
      %v753 = vpack.c.bf16 %v748, %v747
      %v754 = vpack.c.bf16 %v750, %v749
      %v755 = vld [vmem:[%s5] sm:$0xf]
      %v756 = vld [vmem:[%s5 + $0x4] sm:$0xf]
      %v757 = vld [vmem:[%s5 + $0x8] sm:$0xf]
      %v758 = vld [vmem:[%s5 + $0xc] sm:$0xf]
      %v759 = vld [vmem:[%s5 + $0x10] sm:$0xf]
      %v760 = vld [vmem:[%s5 + $0x14] sm:$0xf]
      %v761 = vld [vmem:[%s5 + $0x18] sm:$0xf]
      %v762 = vld [vmem:[%s5 + $0x1c] sm:$0xf]
      %v763 = vld [vmem:[%s5 + $0x20] sm:$0xf]
      %v764 = vld [vmem:[%s5 + $0x24] sm:$0xf]
      %v765 = vld [vmem:[%s5 + $0x28] sm:$0xf]
      %v766 = vld [vmem:[%s5 + $0x2c] sm:$0xf]
      %v767 = vld [vmem:[%s5 + $0x30] sm:$0xf]
      %v768 = vld [vmem:[%s5 + $0x34] sm:$0xf]
      %v769 = vld [vmem:[%s5 + $0x38] sm:$0xf]
      %v770 = vld [vmem:[%s5 + $0x3c] sm:$0xf]
      %v771 = vld [vmem:[%s6] sm:$0x1]
      %v773 = vperm.slane %v771, 0
      %v791 = vunpack.c.l.b16 %v755
      %v792 = vunpack.c.l.b16 %v756
      %v793 = vunpack.c.l.b16 %v757
      %v794 = vunpack.c.l.b16 %v758
      %v795 = vunpack.c.l.b16 %v759
      %v796 = vunpack.c.l.b16 %v760
      %v797 = vunpack.c.l.b16 %v761
      %v798 = vunpack.c.l.b16 %v762
      %v799 = vunpack.c.l.b16 %v763
      %v800 = vunpack.c.l.b16 %v764
      %v801 = vunpack.c.l.b16 %v765
      %v802 = vunpack.c.l.b16 %v766
      %v803 = vunpack.c.l.b16 %v767
      %v804 = vunpack.c.l.b16 %v768
      %v805 = vunpack.c.l.b16 %v769
      %v806 = vunpack.c.l.b16 %v770
      %v807 = vpack.c.b16 %v792, %v791
      %v808 = vpack.c.b16 %v794, %v793
      %v809 = vpack.c.b16 %v796, %v795
      %v810 = vpack.c.b16 %v798, %v797
      %v811 = vpack.c.b16 %v800, %v799
      %v812 = vpack.c.b16 %v802, %v801
      %v813 = vpack.c.b16 %v804, %v803
      %v814 = vpack.c.b16 %v806, %v805
      %823 = vmatpush.bf16.msra.mxu0 %v814
      %824 = vmatpush.bf16.msra.mxu0 %v813
      %825 = vmatpush.bf16.msra.mxu0 %v812
      %826 = vmatpush.bf16.msra.mxu0 %v811
      %827 = vmatpush.bf16.msra.mxu0 %v810
      %828 = vmatpush.bf16.msra.mxu0 %v809
      %829 = vmatpush.bf16.msra.mxu0 %v808
      %830 = vmatpush.bf16.msra.mxu0 %v807
      %831 = vmatmul.bf16.gmra.mxu0 %v751
      %v832 = vpop.f32.mrf.mxu0
      %v833 = vadd.f32 %v773, %v832
      %v834 = vpop.f32.mrf.mxu0
      %v835 = vadd.f32 %v773, %v834
      %836 = vmatmul.bf16.gmra.mxu0 %v752
      %v837 = vpop.f32.mrf.mxu0
      %v838 = vadd.f32 %v773, %v837
      %v839 = vpop.f32.mrf.mxu0
      %v840 = vadd.f32 %v773, %v839
      %841 = vmatmul.bf16.gmra.mxu0 %v753
      %v842 = vpop.f32.mrf.mxu0
      %v843 = vadd.f32 %v773, %v842
      %v844 = vpop.f32.mrf.mxu0
      %v845 = vadd.f32 %v773, %v844
      %846 = vmatmul.bf16.gmra.mxu0 %v754
      %v847 = vpop.f32.mrf.mxu0
      %v848 = vadd.f32 %v773, %v847
      %v849 = vpop.f32.mrf.mxu0
      %v850 = vadd.f32 %v773, %v849
      %851 = vdwg.mxu0
      %v852 = vmul.f32 %v833, 0.01
      %v853 = vmul.f32 %v835, 0.01
      %v854 = vmul.f32 %v838, 0.01
      %v855 = vmul.f32 %v840, 0.01
      %v856 = vmul.f32 %v843, 0.01
      %v857 = vmul.f32 %v845, 0.01
      %v858 = vmul.f32 %v848, 0.01
      %v859 = vmul.f32 %v850, 0.01
      %v860 = vmax.f32 %v833, %v852
      %v861 = vmax.f32 %v835, %v853
      %v862 = vmax.f32 %v838, %v854
      %v863 = vmax.f32 %v840, %v855
      %v864 = vmax.f32 %v843, %v856
      %v865 = vmax.f32 %v845, %v857
      %v866 = vmax.f32 %v848, %v858
      %v867 = vmax.f32 %v850, %v859
      %v868 = vpack.c.bf16 %v861, %v860
      %v869 = vpack.c.bf16 %v863, %v862
      %v870 = vpack.c.bf16 %v865, %v864
      %v871 = vpack.c.bf16 %v867, %v866
      %v872 = vld [vmem:[%s7] sm:$0xf]
      %v873 = vld [vmem:[%s7 + $0x4] sm:$0xf]
      %v874 = vld [vmem:[%s7 + $0x8] sm:$0xf]
      %v875 = vld [vmem:[%s7 + $0xc] sm:$0xf]
      %v876 = vld [vmem:[%s7 + $0x10] sm:$0xf]
      %v877 = vld [vmem:[%s7 + $0x14] sm:$0xf]
      %v878 = vld [vmem:[%s7 + $0x18] sm:$0xf]
      %v879 = vld [vmem:[%s7 + $0x1c] sm:$0xf]
      %v880 = vld [vmem:[%s7 + $0x20] sm:$0xf]
      %v881 = vld [vmem:[%s7 + $0x24] sm:$0xf]
      %v882 = vld [vmem:[%s7 + $0x28] sm:$0xf]
      %v883 = vld [vmem:[%s7 + $0x2c] sm:$0xf]
      %v884 = vld [vmem:[%s7 + $0x30] sm:$0xf]
      %v885 = vld [vmem:[%s7 + $0x34] sm:$0xf]
      %v886 = vld [vmem:[%s7 + $0x38] sm:$0xf]
      %v887 = vld [vmem:[%s7 + $0x3c] sm:$0xf]
      %v888 = vld [vmem:[%s8] sm:$0x1]
      %v890 = vperm.slane %v888, 0
      %v908 = vunpack.c.l.b16 %v872
      %v909 = vunpack.c.l.b16 %v873
      %v910 = vunpack.c.l.b16 %v874
      %v911 = vunpack.c.l.b16 %v875
      %v912 = vunpack.c.l.b16 %v876
      %v913 = vunpack.c.l.b16 %v877
      %v914 = vunpack.c.l.b16 %v878
      %v915 = vunpack.c.l.b16 %v879
      %v916 = vunpack.c.l.b16 %v880
      %v917 = vunpack.c.l.b16 %v881
      %v918 = vunpack.c.l.b16 %v882
      %v919 = vunpack.c.l.b16 %v883
      %v920 = vunpack.c.l.b16 %v884
      %v921 = vunpack.c.l.b16 %v885
      %v922 = vunpack.c.l.b16 %v886
      %v923 = vunpack.c.l.b16 %v887
      %v924 = vpack.c.b16 %v909, %v908
      %v925 = vpack.c.b16 %v911, %v910
      %v926 = vpack.c.b16 %v913, %v912
      %v927 = vpack.c.b16 %v915, %v914
      %v928 = vpack.c.b16 %v917, %v916
      %v929 = vpack.c.b16 %v919, %v918
      %v930 = vpack.c.b16 %v921, %v920
      %v931 = vpack.c.b16 %v923, %v922
      %940 = vmatpush.bf16.msra.mxu0 %v931
      %941 = vmatpush.bf16.msra.mxu0 %v930
      %942 = vmatpush.bf16.msra.mxu0 %v929
      %943 = vmatpush.bf16.msra.mxu0 %v928
      %944 = vmatpush.bf16.msra.mxu0 %v927
      %945 = vmatpush.bf16.msra.mxu0 %v926
      %946 = vmatpush.bf16.msra.mxu0 %v925
      %947 = vmatpush.bf16.msra.mxu0 %v924
      %948 = vmatmul.bf16.gmra.mxu0 %v868
      %v949 = vpop.f32.mrf.mxu0
      %v950 = vadd.f32 %v890, %v949
      %v951 = vpop.f32.mrf.mxu0
      %v952 = vadd.f32 %v890, %v951
      %953 = vmatmul.bf16.gmra.mxu0 %v869
      %v954 = vpop.f32.mrf.mxu0
      %v955 = vadd.f32 %v890, %v954
      %v956 = vpop.f32.mrf.mxu0
      %v957 = vadd.f32 %v890, %v956
      %958 = vmatmul.bf16.gmra.mxu0 %v870
      %v959 = vpop.f32.mrf.mxu0
      %v960 = vadd.f32 %v890, %v959
      %v961 = vpop.f32.mrf.mxu0
      %v962 = vadd.f32 %v890, %v961
      %963 = vmatmul.bf16.gmra.mxu0 %v871
      %v964 = vpop.f32.mrf.mxu0
      %v965 = vadd.f32 %v890, %v964
      %v966 = vpop.f32.mrf.mxu0
      %v967 = vadd.f32 %v890, %v966
      %968 = vdwg.mxu0
      %v969 = vmul.f32 %v950, 0.01
      %v970 = vmul.f32 %v952, 0.01
      %v971 = vmul.f32 %v955, 0.01
      %v972 = vmul.f32 %v957, 0.01
      %v973 = vmul.f32 %v960, 0.01
      %v974 = vmul.f32 %v962, 0.01
      %v975 = vmul.f32 %v965, 0.01
      %v976 = vmul.f32 %v967, 0.01
      %v977 = vmax.f32 %v950, %v969
      %v978 = vmax.f32 %v952, %v970
      %v979 = vmax.f32 %v955, %v971
      %v980 = vmax.f32 %v957, %v972
      %v981 = vmax.f32 %v960, %v973
      %v982 = vmax.f32 %v962, %v974
      %v983 = vmax.f32 %v965, %v975
      %v984 = vmax.f32 %v967, %v976
      %v985 = vpack.c.bf16 %v978, %v977
      %v986 = vpack.c.bf16 %v980, %v979
      %v987 = vpack.c.bf16 %v982, %v981
      %v988 = vpack.c.bf16 %v984, %v983
      %v989 = vld [vmem:[%s9] sm:$0xf]
      %v990 = vld [vmem:[%s9 + $0x4] sm:$0xf]
      %v991 = vld [vmem:[%s9 + $0x8] sm:$0xf]
      %v992 = vld [vmem:[%s9 + $0xc] sm:$0xf]
      %v993 = vld [vmem:[%s9 + $0x10] sm:$0xf]
      %v994 = vld [vmem:[%s9 + $0x14] sm:$0xf]
      %v995 = vld [vmem:[%s9 + $0x18] sm:$0xf]
      %v996 = vld [vmem:[%s9 + $0x1c] sm:$0xf]
      %v997 = vld [vmem:[%s9 + $0x20] sm:$0xf]
      %v998 = vld [vmem:[%s9 + $0x24] sm:$0xf]
      %v999 = vld [vmem:[%s9 + $0x28] sm:$0xf]
      %v1000 = vld [vmem:[%s9 + $0x2c] sm:$0xf]
      %v1001 = vld [vmem:[%s9 + $0x30] sm:$0xf]
      %v1002 = vld [vmem:[%s9 + $0x34] sm:$0xf]
      %v1003 = vld [vmem:[%s9 + $0x38] sm:$0xf]
      %v1004 = vld [vmem:[%s9 + $0x3c] sm:$0xf]
      %v1005 = vld [vmem:[%s10] sm:$0x1]
      %v1007 = vperm.slane %v1005, 0
      %v1025 = vunpack.c.l.b16 %v989
      %v1026 = vunpack.c.l.b16 %v990
      %v1027 = vunpack.c.l.b16 %v991
      %v1028 = vunpack.c.l.b16 %v992
      %v1029 = vunpack.c.l.b16 %v993
      %v1030 = vunpack.c.l.b16 %v994
      %v1031 = vunpack.c.l.b16 %v995
      %v1032 = vunpack.c.l.b16 %v996
      %v1033 = vunpack.c.l.b16 %v997
      %v1034 = vunpack.c.l.b16 %v998
      %v1035 = vunpack.c.l.b16 %v999
      %v1036 = vunpack.c.l.b16 %v1000
      %v1037 = vunpack.c.l.b16 %v1001
      %v1038 = vunpack.c.l.b16 %v1002
      %v1039 = vunpack.c.l.b16 %v1003
      %v1040 = vunpack.c.l.b16 %v1004
      %v1041 = vpack.c.b16 %v1026, %v1025
      %v1042 = vpack.c.b16 %v1028, %v1027
      %v1043 = vpack.c.b16 %v1030, %v1029
      %v1044 = vpack.c.b16 %v1032, %v1031
      %v1045 = vpack.c.b16 %v1034, %v1033
      %v1046 = vpack.c.b16 %v1036, %v1035
      %v1047 = vpack.c.b16 %v1038, %v1037
      %v1048 = vpack.c.b16 %v1040, %v1039
      %1057 = vmatpush.bf16.msra.mxu0 %v1048
      %1058 = vmatpush.bf16.msra.mxu0 %v1047
      %1059 = vmatpush.bf16.msra.mxu0 %v1046
      %1060 = vmatpush.bf16.msra.mxu0 %v1045
      %1061 = vmatpush.bf16.msra.mxu0 %v1044
      %1062 = vmatpush.bf16.msra.mxu0 %v1043
      %1063 = vmatpush.bf16.msra.mxu0 %v1042
      %1064 = vmatpush.bf16.msra.mxu0 %v1041
      %1065 = vmatmul.bf16.gmra.mxu0 %v985
      %v1066 = vpop.f32.mrf.mxu0
      %v1067 = vadd.f32 %v1007, %v1066
      %v1068 = vpop.f32.mrf.mxu0
      %v1069 = vadd.f32 %v1007, %v1068
      %1070 = vmatmul.bf16.gmra.mxu0 %v986
      %v1071 = vpop.f32.mrf.mxu0
      %v1072 = vadd.f32 %v1007, %v1071
      %v1073 = vpop.f32.mrf.mxu0
      %v1074 = vadd.f32 %v1007, %v1073
      %1075 = vmatmul.bf16.gmra.mxu0 %v987
      %v1076 = vpop.f32.mrf.mxu0
      %v1077 = vadd.f32 %v1007, %v1076
      %v1078 = vpop.f32.mrf.mxu0
      %v1079 = vadd.f32 %v1007, %v1078
      %1080 = vmatmul.bf16.gmra.mxu0 %v988
      %v1081 = vpop.f32.mrf.mxu0
      %v1082 = vadd.f32 %v1007, %v1081
      %v1083 = vpop.f32.mrf.mxu0
      %v1084 = vadd.f32 %v1007, %v1083
      %1085 = vdwg.mxu0
      %v1086 = vpack.c.bf16 %v1067, %v1067
      %v1087 = vpack.c.bf16 %v1069, %v1069
      %v1088 = vpack.c.bf16 %v1072, %v1072
      %v1089 = vpack.c.bf16 %v1074, %v1074
      %v1090 = vpack.c.bf16 %v1077, %v1077
      %v1091 = vpack.c.bf16 %v1079, %v1079
      %v1092 = vpack.c.bf16 %v1082, %v1082
      %v1093 = vpack.c.bf16 %v1084, %v1084
      %1094 = vst [vmem:[%s388] sm:$0xf] %v1086
      %1095 = vst [vmem:[%s388 + $0x4] sm:$0xf] %v1087
      %1096 = vst [vmem:[%s388 + $0x8] sm:$0xf] %v1088
      %1097 = vst [vmem:[%s388 + $0xc] sm:$0xf] %v1089
      %1098 = vst [vmem:[%s388 + $0x10] sm:$0xf] %v1090
      %1099 = vst [vmem:[%s388 + $0x14] sm:$0xf] %v1091
      %1100 = vst [vmem:[%s388 + $0x18] sm:$0xf] %v1092
      %1101 = vst [vmem:[%s388 + $0x1c] sm:$0xf] %v1093
      %s1102 = smul.u32 8, %s22
      %p1103 = scmp.lt.s32.totalorder %s1102, 31
      %s1104 = scalar_select %p1103, %s1102, 31
      %s1105 = smul.addr %s1104, 4
      %s1106 = scalar_lea.vmem %s11, %s1105
      // Predicated region
      $region65: #{deep_aero_net.1} parent=63 // pred_check
        %p1107 = pneg %p276
      $region66: #{deep_aero_net.1} parent=63 // pred_check_branch
        %1109 = sbr.rel (%p1107) target = $region68
      $region67: #{deep_aero_net.1} parent=63 // pred_region
        %s1110 = smul.u32 8, %s22
      $region68: #{deep_aero_net.1} parent=63 // pred_fallthru
        _
    $region64: #{deep_aero_net.1} parent=5 // pred_fallthru
      _
    %p1111 = scmp.le.s32.totalorder 2, %s17
    // Predicated region
    $region69: #{deep_aero_net.1} parent=5 // pred_check
      %p1112 = pneg %p1111
    $region70: #{deep_aero_net.1} parent=5 // pred_check_branch
      %1114 = sbr.rel (%p1112) target = $region72
    $region71: #{deep_aero_net.1} parent=5 // pred_region
      %s1115 = ssub.s32 %s17, 2
      // Predicated region
      $region73: #{deep_aero_net.1} parent=71 // pred_check
        %p1116 = pneg %p282
      $region74: #{deep_aero_net.1} parent=71 // pred_check_branch
        %1118 = sbr.rel (%p1116) target = $region76
      $region75: #{deep_aero_net.1} parent=71 // pred_region
        %s1119 = smul.u32 8, %s23
        %p1120 = scmp.lt.s32.totalorder %s1119, 31
        %s1121 = scalar_select %p1120, %s1119, 31
        %s1122 = smul.addr %s1121, 4
        %s1123 = scalar_lea.vmem %s11, %s1122
      $region76: #{deep_aero_net.1} parent=71 // pred_fallthru
        _
    $region72: #{deep_aero_net.1} parent=5 // pred_fallthru
      _
  $region6: #{deep_aero_net.1} parent=0 // loop_footer
    %s21 = sadd.s32 1, %s17
  $region7: #{deep_aero_net.1} parent=0 // loop_footer_branch
    %16 = sbr.rel target = $region3
  $region8: #{deep_aero_net.1} parent=0 // loop_exit
    _

</llo_original>
